<compile_context>
chip_gen: v7x
topology: tpu7x:2x2x1
jax: 0.10.0
libtpu: 0.0.40
codegen_flags: <defaults>
</compile_context>

<pallas_src>
import functools

import jax
import jax.numpy as jnp
from jax.experimental import pallas as pl
from jax.experimental.pallas import tpu as pltpu


def _vq_kernel(x_ref, emb_kc_ref, emb_ck_ref, esqh_ref, q_ref, idx_ref, *,
               bf16_distance):
    """One (batch, spatial-tile) grid step.

    x_ref:      (1, C, T)  activations, channel-major (lane-dense spatial)
    emb_kc_ref: (K, C)     codebook rows (bf16 when bf16_distance)   [const]
    emb_ck_ref: (C, K)     codebook transposed, f32 (exact gather)   [const]
    esqh_ref:   (K, 1)     0.5 * ||e_k||^2, f32                      [const]
    q_ref:      (1, C, T)  quantized output, same layout as x
    idx_ref:    (1, 1, T)  argmin indices, int32, lane-dense
    """
    x = x_ref[0]                                   # (C, T)
    e_kc = emb_kc_ref[...]                         # (K, C)
    k = e_kc.shape[0]

    # argmin_k ||x - e_k||^2  ==  argmin_k (0.5*||e_k||^2 - x . e_k)
    if bf16_distance:
        cross = jnp.dot(e_kc, x.astype(jnp.bfloat16),
                        preferred_element_type=jnp.float32)           # (K, T)
    else:
        cross = jnp.dot(e_kc, x, preferred_element_type=jnp.float32)  # (K, T)
    dist = esqh_ref[...] - cross                   # (K, T); (K,1) bcast on lanes

    # First-occurrence argmin over the sublane (K) axis without lax.argmin:
    # plain min-reductions + selects lower cleanly in Mosaic.
    dmin = jnp.min(dist, axis=0, keepdims=True)                        # (1, T)
    k_iota = jax.lax.broadcasted_iota(jnp.int32, (k, 1), 0)            # (K, 1)
    cand = jnp.where(dist <= dmin, k_iota, jnp.int32(k))               # (K, T)
    idx_row = jnp.min(cand, axis=0, keepdims=True)                     # (1, T)
    idx_ref[...] = idx_row[None]                                       # (1,1,T)

    # Exact gather: q = E^T @ one_hot (one_hot has exactly one 1 per column),
    # kept in f32 so the result is bit-exact codebook rows.
    onehot = (k_iota == idx_row).astype(jnp.float32)                   # (K, T)
    q_ct = jnp.dot(emb_ck_ref[...], onehot,
                   preferred_element_type=jnp.float32)                 # (C, T)
    q_ref[...] = q_ct[None].astype(q_ref.dtype)


def _pad(v, m):
    return ((v + m - 1) // m) * m


def _estimate_vmem_bytes(tile_n, c, k, bf16_distance):
    """Padding-aware VMEM footprint (8-sublane / 128-lane tiling)."""
    f32 = 4
    c_p = _pad(c, 8)
    k_p = _pad(k, 8)
    t_p = _pad(tile_n, 128)
    e_bytes = 2 if bf16_distance else 4
    # Double-buffered pipeline blocks (inputs + outputs).
    blocks = 2 * (c_p * t_p * f32                    # x tile
                  + c_p * t_p * f32                  # q tile
                  + 8 * t_p * 4                      # idx tile (1 -> 8 sublanes)
                  + k_p * _pad(c, 128) * e_bytes     # emb (K, C)
                  + c_p * _pad(k, 128) * f32         # emb (C, K)
                  + k_p * 128 * f32)                 # half-norms (K, 1)
    # Live dense intermediates: cross/dist, onehot, headroom.
    inter = 3 * k_p * t_p * f32
    return blocks + inter


def _vmem_budget_bytes():
    phys = 64 * 1024 * 1024           # v7x physical floor; v5e/v6e have 128 MiB
    try:
        phys = int(pltpu.get_tpu_info().vmem_capacity_bytes)
    except Exception:
        pass
    # Leave at least half for compiler scratch / double-buffer slack.
    return min(phys // 2, 48 * 1024 * 1024)


def _pick_tile_n(hw, batch, c, k, vmem_budget, bf16_distance):
    cands = [t for t in (16384, 8192, 4096, 2048, 1024, 512, 256, 128)
             if hw % t == 0
             and _estimate_vmem_bytes(t, c, k, bf16_distance) <= vmem_budget]
    if not cands:
        # Unaligned or tiny spatial extent: one full-width block per image.
        # TODO(synk): masked tail tile for huge, non-128-multiple H*W.
        return hw
    # Prefer >=4 total grid steps (>=2 per v7x TensorCore keeps the DMA
    # pipeline filled), then >=2, else just take the largest tile.
    for min_steps in (4, 2, 1):
        for t in cands:                          # largest -> smallest
            if batch * (hw // t) >= min_steps:
                return t
    return cands[-1]


def vector_quantize(x_nchw, embedding, *, tile_n=None, bf16_distance=False):
    """Pallas VectorQuantizer forward.

    x_nchw:    (B, C, H, W) float32
    embedding: (num_embs, C) float32 codebook
    returns:   (quantized (B, C, H, W), indices (B*H*W,) int32)
    """
    b, c, h, w = x_nchw.shape
    k, emb_size = embedding.shape
    assert c == emb_size, f"Expected {emb_size} channels, got {c}"
    hw = h * w

    # Channel-major end-to-end: pure reshape, no HBM transpose pass.
    x3 = x_nchw.reshape(b, c, hw)

    # Codebook operands, hoisted & computed once per call (not per tile).
    dist_dtype = jnp.bfloat16 if bf16_distance else jnp.float32
    emb_kc = embedding.astype(dist_dtype)                            # (K, C)
    emb_ck = jnp.transpose(embedding.astype(jnp.float32))            # (C, K)
    e_sq_half = 0.5 * jnp.sum(embedding.astype(jnp.float32) ** 2,
                              axis=1, keepdims=True)                 # (K, 1)

    vmem_budget = _vmem_budget_bytes()
    if tile_n is None:
        tile_n = _pick_tile_n(hw, b, c, k, vmem_budget, bf16_distance)
    assert hw % tile_n == 0, "tile_n must divide H*W"
    n_tiles = hw // tile_n

    est = _estimate_vmem_bytes(tile_n, c, k, bf16_distance)
    # Always pass an explicit limit (v5e scoped default is only 16 MiB),
    # capped well under v7x's 64 MiB physical VMEM.
    vmem_limit = int(min(max(2 * est, 16 * 1024 * 1024), 48 * 1024 * 1024))

    q3, idx3 = pl.pallas_call(
        functools.partial(_vq_kernel, bf16_distance=bf16_distance),
        out_shape=(
            jax.ShapeDtypeStruct((b, c, hw), x_nchw.dtype),
            jax.ShapeDtypeStruct((b, 1, hw), jnp.int32),
        ),
        grid_spec=pltpu.PrefetchScalarGridSpec(
            num_scalar_prefetch=0,
            grid=(b, n_tiles),
            in_specs=[
                pl.BlockSpec((1, c, tile_n), lambda bi, si: (bi, 0, si)),  # x
                pl.BlockSpec((k, c), lambda bi, si: (0, 0)),   # codebook (K,C)
                pl.BlockSpec((c, k), lambda bi, si: (0, 0)),   # codebook (C,K)
                pl.BlockSpec((k, 1), lambda bi, si: (0, 0)),   # 0.5*||E||^2
            ],
            out_specs=[
                pl.BlockSpec((1, c, tile_n), lambda bi, si: (bi, 0, si)),
                pl.BlockSpec((1, 1, tile_n), lambda bi, si: (bi, 0, si)),
            ],
        ),
        compiler_params=pltpu.CompilerParams(
            dimension_semantics=("parallel", "parallel"),
            vmem_limit_bytes=vmem_limit,
        ),
    )(x3, emb_kc, emb_ck, e_sq_half)

    quantized = q3.reshape(b, c, h, w)          # free reshape
    # TODO(synk): torch returns int64 indices; int32 here.
    indices = idx3.reshape(b * hw)
    return quantized, indices


if __name__ == "__main__":
    # Module config: emb_size (=C) and num_embs.
    emb_size = 4
    num_embs = 16
    b, h, w = 2, 16, 16

    key = jax.random.PRNGKey(0)
    k_x, k_e = jax.random.split(key)

    # nn.Embedding weight ~ U(-1/num_embs, 1/num_embs), deterministic in-script.
    embedding = jax.random.uniform(
        k_e, (num_embs, emb_size), dtype=jnp.float32,
        minval=-1.0 / num_embs, maxval=1.0 / num_embs)

    x = jax.random.normal(k_x, (b, emb_size, h, w), dtype=jnp.float32)

    quantized, indices = vector_quantize(x, embedding)
    jax.block_until_ready((quantized, indices))

    # Sanity check against a plain-JAX reference.
    n = b * h * w
    x_flat = jnp.transpose(x, (0, 2, 3, 1)).reshape(n, emb_size)
    d_ref = jnp.sum((x_flat[:, None, :] - embedding[None, :, :]) ** 2, axis=-1)
    idx_ref = jnp.argmin(d_ref, axis=1).astype(jnp.int32)

    assert quantized.shape == (b, emb_size, h, w)
    assert indices.shape == (n,)
    # Chosen codes must achieve the minimum squared distance (tolerant to
    # fp-rounding differences between the two distance formulations on ties).
    rows = jnp.arange(n)
    assert jnp.all(d_ref[rows, indices] <= d_ref[rows, idx_ref] + 1e-5)
    # Gathered embeddings are exact codebook rows for the chosen indices.
    q_expect = jnp.transpose(embedding[indices].reshape(b, h, w, emb_size),
                             (0, 3, 1, 2))
    assert jnp.array_equal(quantized, q_expect)

    print("KERNEL_OK")
</pallas_src>

<mosaic_0001>
module attributes {stable_mosaic.version = 11 : i64} {
  func.func @_vq_kernel(%arg0: i32, %arg1: i32, %arg2: memref<1x4x128xf32, #tpu.memory_space<vmem>>, %arg3: memref<16x4xf32, #tpu.memory_space<vmem>>, %arg4: memref<4x16xf32, #tpu.memory_space<vmem>>, %arg5: memref<16x1xf32, #tpu.memory_space<vmem>>, %arg6: memref<1x4x128xf32, #tpu.memory_space<vmem>>, %arg7: memref<1x1x128xi32, #tpu.memory_space<vmem>>) attributes {dimension_semantics = [#tpu.dimension_semantics<parallel>, #tpu.dimension_semantics<parallel>], iteration_bounds = array<i64: 2, 2>, scalar_prefetch = 0 : i64, scratch_operands = 0 : i64, tpu.core_type = #tpu.core_type<tc>, window_params = [{transform_indices = @transform_0, window_bounds = array<i64: 1, 4, 128>}, {pipeline_mode = #tpu.pipeline_mode<synchronous>, transform_indices = @transform_1, window_bounds = array<i64: 16, 4>}, {pipeline_mode = #tpu.pipeline_mode<synchronous>, transform_indices = @transform_2, window_bounds = array<i64: 4, 16>}, {pipeline_mode = #tpu.pipeline_mode<synchronous>, transform_indices = @transform_3, window_bounds = array<i64: 16, 1>}, {transform_indices = @transform_4, window_bounds = array<i64: 1, 4, 128>}, {transform_indices = @transform_5, window_bounds = array<i64: 1, 1, 128>}]} {
    %c0 = arith.constant 0 : index
    %c0_0 = arith.constant 0 : index
    %c0_1 = arith.constant 0 : index
    %0 = vector.load %arg2[%c0, %c0_0, %c0_1] : memref<1x4x128xf32, #tpu.memory_space<vmem>>, vector<1x4x128xf32>
    %1 = vector.shape_cast %0 : vector<1x4x128xf32> to vector<4x128xf32>
    %c0_2 = arith.constant 0 : index
    %c0_3 = arith.constant 0 : index
    %2 = vector.load %arg3[%c0_2, %c0_3] : memref<16x4xf32, #tpu.memory_space<vmem>>, vector<16x4xf32>
    %cst = arith.constant dense<0.000000e+00> : vector<16x128xf32>
    %3 = tpu.matmul %2, %1, %cst {dimension_numbers = #tpu.dot_dimension_numbers<[1], [0], [0], [1], [0, 0, 1, 1], [], []>} : vector<16x4xf32>, vector<4x128xf32>, vector<16x128xf32> -> vector<16x128xf32>
    %c0_4 = arith.constant 0 : index
    %c0_5 = arith.constant 0 : index
    %4 = vector.load %arg5[%c0_4, %c0_5] : memref<16x1xf32, #tpu.memory_space<vmem>>, vector<16x1xf32>
    %5 = vector.broadcast %4 : vector<16x1xf32> to vector<16x128xf32>
    %6 = arith.subf %5, %3 : vector<16x128xf32>
    %cst_6 = arith.constant dense<0x7F800000> : vector<128xf32>
    %7 = vector.multi_reduction <minimumf>, %6, %cst_6 [0] : vector<16x128xf32> to vector<128xf32>
    %8 = vector.shape_cast %7 : vector<128xf32> to vector<1x128xf32>
    %9 = tpu.iota {dimensions = array<i32: 0>} : vector<16x1xi32>
    %10 = vector.broadcast %8 : vector<1x128xf32> to vector<16x128xf32>
    %11 = arith.cmpf ole, %6, %10 : vector<16x128xf32>
    %c16_i32 = arith.constant 16 : i32
    %12 = vector.shape_cast %9 : vector<16x1xi32> to vector<16x1xi32>
    %13 = vector.broadcast %12 : vector<16x1xi32> to vector<16x128xi32>
    %14 = vector.broadcast %c16_i32 : i32 to vector<16x128xi32>
    %15 = arith.select %11, %13, %14 : vector<16x128xi1>, vector<16x128xi32>
    %cst_7 = arith.constant dense<2147483647> : vector<128xi32>
    %16 = vector.multi_reduction <minsi>, %15, %cst_7 [0] : vector<16x128xi32> to vector<128xi32>
    %17 = vector.shape_cast %16 : vector<128xi32> to vector<1x128xi32>
    %18 = vector.shape_cast %17 : vector<1x128xi32> to vector<1x1x128xi32>
    %c0_8 = arith.constant 0 : index
    %c0_9 = arith.constant 0 : index
    %c0_10 = arith.constant 0 : index
    %19 = vector.load %arg7[%c0_8, %c0_9, %c0_10] : memref<1x1x128xi32, #tpu.memory_space<vmem>>, vector<1x1x128xi32>
    tpu.vector_store %arg7[%c0_8, %c0_9, %c0_10], %18 {strides = array<i32>} : memref<1x1x128xi32, #tpu.memory_space<vmem>>, vector<1x1x128xi32>,
    %20 = vector.broadcast %9 : vector<16x1xi32> to vector<16x128xi32>
    %21 = vector.broadcast %17 : vector<1x128xi32> to vector<16x128xi32>
    %22 = arith.cmpi eq, %20, %21 : vector<16x128xi32>
    %23 = arith.extui %22 : vector<16x128xi1> to vector<16x128xi32>
    %24 = arith.sitofp %23 : vector<16x128xi32> to vector<16x128xf32>
    %c0_11 = arith.constant 0 : index
    %c0_12 = arith.constant 0 : index
    %25 = vector.load %arg4[%c0_11, %c0_12] : memref<4x16xf32, #tpu.memory_space<vmem>>, vector<4x16xf32>
    %cst_13 = arith.constant dense<0.000000e+00> : vector<4x128xf32>
    %26 = tpu.matmul %25, %24, %cst_13 {dimension_numbers = #tpu.dot_dimension_numbers<[1], [0], [0], [1], [0, 0, 1, 1], [], []>} : vector<4x16xf32>, vector<16x128xf32>, vector<4x128xf32> -> vector<4x128xf32>
    %27 = vector.shape_cast %26 : vector<4x128xf32> to vector<1x4x128xf32>
    %c0_14 = arith.constant 0 : index
    %c0_15 = arith.constant 0 : index
    %c0_16 = arith.constant 0 : index
    %28 = vector.load %arg6[%c0_14, %c0_15, %c0_16] : memref<1x4x128xf32, #tpu.memory_space<vmem>>, vector<1x4x128xf32>
    tpu.vector_store %arg6[%c0_14, %c0_15, %c0_16], %27 {strides = array<i32>} : memref<1x4x128xf32, #tpu.memory_space<vmem>>, vector<1x4x128xf32>,
    return
  }
  func.func @transform_0(%arg0: i32, %arg1: i32) -> (i32, i32, i32) {
    %c0_i32 = arith.constant 0 : i32
    %c0_i32_0 = arith.constant 0 : i32
    return %arg0, %c0_i32, %arg1 : i32, i32, i32
  }
  func.func @transform_1(%arg0: i32, %arg1: i32) -> (i32, i32) {
    %c0_i32 = arith.constant 0 : i32
    %c0_i32_0 = arith.constant 0 : i32
    %c0_i32_1 = arith.constant 0 : i32
    return %c0_i32, %c0_i32_0 : i32, i32
  }
  func.func @transform_2(%arg0: i32, %arg1: i32) -> (i32, i32) {
    %c0_i32 = arith.constant 0 : i32
    %c0_i32_0 = arith.constant 0 : i32
    %c0_i32_1 = arith.constant 0 : i32
    return %c0_i32, %c0_i32_0 : i32, i32
  }
  func.func @transform_3(%arg0: i32, %arg1: i32) -> (i32, i32) {
    %c0_i32 = arith.constant 0 : i32
    %c0_i32_0 = arith.constant 0 : i32
    %c0_i32_1 = arith.constant 0 : i32
    return %c0_i32, %c0_i32_0 : i32, i32
  }
  func.func @transform_4(%arg0: i32, %arg1: i32) -> (i32, i32, i32) {
    %c0_i32 = arith.constant 0 : i32
    %c0_i32_0 = arith.constant 0 : i32
    return %arg0, %c0_i32, %arg1 : i32, i32, i32
  }
  func.func @transform_5(%arg0: i32, %arg1: i32) -> (i32, i32, i32) {
    %c0_i32 = arith.constant 0 : i32
    %c0_i32_0 = arith.constant 0 : i32
    return %arg0, %c0_i32, %arg1 : i32, i32, i32
  }
}

</mosaic_0001>

<llo_original>
// kernel: tpu_custom_call.1
$region0: #{tpu_custom_call.1}
  #allocation0 [shape = 'u32[]', space=smem, size = 0x4, offset = 0x4, fixed_abs, tag = 'smem constant byte address 0x4 - core index']
  #allocation1 [shape = 'u32[144,128]{1,0:T(1,128)}', space=vmem, size = 0x12000, scoped, tag = 'internal scratch']
  %s0 = inlined_call_operand.vmem [shape: f32[2,4,256], index: 0, kind: input, shape index: {}]
  %s1 = inlined_call_operand.vmem [shape: f32[16,4], index: 1, kind: input, shape index: {}]
  %s2 = inlined_call_operand.vmem [shape: f32[4,16], index: 2, kind: input, shape index: {}]
  %s3 = inlined_call_operand.vmem [shape: f32[16,1], index: 3, kind: input, shape index: {}]
  %s4 = inlined_call_operand.hbm [shape: f32[2,4,256], index: 4, kind: output, shape index: {0}]
  %s5 = inlined_call_operand.hbm [shape: s32[2,1,256], index: 5, kind: output, shape index: {1}]
  %6 = xla_tuple %s4, %s5
  %s7 = sld [smem:[#allocation0]]
  $region57: #{tpu_custom_call.1} parent=0
    _
  %s9 = ssub.s32 1, %s7
  %s10 = scalar_select 0, %s9, %s7
  $region1: #{tpu_custom_call.1} parent=0
    #allocation2 [shape = 'u8[4096]{0}', space=vmem, size = 0x1000, scoped, tag = 'output window, operand 0']
    #allocation3 [shape = 's32[2]{0}', space=sflag, size = 0x8, scoped, tag = 'scoped memory for tpu_custom_call.1']
    #allocation4 [shape = 'u8[1024]{0}', space=vmem, size = 0x400, scoped, tag = 'output window, operand 1']
    #allocation5 [shape = 's32[2]{0}', space=sflag, size = 0x8, scoped, tag = 'scoped memory for tpu_custom_call.1']
    %11 = vsyncpa [#allocation3], 0
    %s12 = scalar_lea.sflag [#allocation3], 1
    %13 = vsyncpa %s12, 0
    %14 = vsyncpa [#allocation5], 0
    %s15 = scalar_lea.sflag [#allocation5], 1
    %16 = vsyncpa %s15, 0
    loop: start=0, step=1, limit=6
    $region2: #{tpu_custom_call.1} parent=1 // loop_pre_header
      _
    $region3: #{tpu_custom_call.1} parent=1 // loop_header
      %s18 = sphi 0, %s22
      %p19 = scmp.ge.s32.totalorder %s18, 6
      %s25 = sphi 0, %s37
      %s26 = sphi 0, %s33
      %s27 = sphi 0, %s25
      %s28 = sphi 0, %s26
      %s29 = sphi 0, %s27
      %s30 = sphi 0, %s28
      %s42 = sphi 0, %s44
      %s45 = sphi 0, %s42
      %s46 = sphi 0, %s45
      %s62 = sphi 0, %s46
      %s66 = sphi 0, %s66
      %s68 = sphi 0, %s66
      %s69 = sphi 0, %s68
      %s83 = sphi 0, %s69
      %s87 = sphi 0, %s87
      %s89 = sphi 0, %s87
      %s90 = sphi 0, %s89
      %s104 = sphi 0, %s90
      %s108 = sphi 0, %s108
      %s110 = sphi 0, %s108
      %s111 = sphi 0, %s110
      %s125 = sphi 0, %s111
      %s133 = sphi 0, %s135
      %s136 = sphi 0, %s133
      %s137 = sphi 0, %s136
      %s153 = sphi 0, %s137
      %s161 = sphi 0, %s163
      %s164 = sphi 0, %s161
      %s165 = sphi 0, %s164
      %s181 = sphi 0, %s165
    $region4: #{tpu_custom_call.1} parent=1 // loop_header_branch
      %21 = sbr.rel (%p19) target = $region8
    $region5: #{tpu_custom_call.1} parent=1 // loop_body
      %s23 = ssub.s32 %s18, 1
      %s24 = ssub.s32 %s18, 2
      %s31 = sadd.s32 1, %s26
      %p32 = scmp.ge.s32.totalorder %s31, 2
      %s33 = scalar_select %p32, 0, %s31
      %s34 = sadd.s32 1, %s25
      %s35 = scalar_select %p32, %s34, %s25
      %p36 = scmp.ge.s32.totalorder %s35, 2
      %s37 = scalar_select %p36, 0, %s35
      %s38 = ssub.s32 %s25, %s37
      %s39 = ssub.s32 %s26, %s33
      %s40 = sor.u32 %s38, %s39
      %p41 = scmp.eq.s32.totalorder %s40, 0
      %s43 = sadd.s32 %s42, 1
      %s44 = scalar_select %p41, %s42, %s43
      %p47 = pneg %p41
      %p48 = scmp.eq.s32.totalorder %s18, 3
      %p49 = por %p47, %p48
      %p50 = scmp.ne.s32.totalorder %s42, %s45
      %p51 = scmp.eq.s32.totalorder %s18, 0
      %p52 = por %p50, %p51
      %p53 = scmp.ne.s32.totalorder %s42, %s45
      %p54 = scmp.eq.s32.totalorder %s23, 3
      %p55 = por %p53, %p54
      %p56 = scmp.ne.s32.totalorder %s45, %s46
      %p57 = scmp.eq.s32.totalorder %s23, 0
      %p58 = por %p56, %p57
      %p59 = scmp.ne.s32.totalorder %s45, %s46
      %p60 = scmp.eq.s32.totalorder %s24, 3
      %p61 = por %p59, %p60
      %p63 = scmp.ne.s32.totalorder %s46, %s62
      %p64 = scmp.eq.s32.totalorder %s24, 0
      %p65 = por %p63, %p64
      %s67 = sadd.s32 %s66, 1
      %p70 = scmp.eq.s32.totalorder %s18, 3
      %p71 = scmp.ne.s32.totalorder %s66, %s68
      %p72 = scmp.eq.s32.totalorder %s18, 0
      %p73 = por %p71, %p72
      %p74 = scmp.ne.s32.totalorder %s66, %s68
      %p75 = scmp.eq.s32.totalorder %s23, 3
      %p76 = por %p74, %p75
      %p77 = scmp.ne.s32.totalorder %s68, %s69
      %p78 = scmp.eq.s32.totalorder %s23, 0
      %p79 = por %p77, %p78
      %p80 = scmp.ne.s32.totalorder %s68, %s69
      %p81 = scmp.eq.s32.totalorder %s24, 3
      %p82 = por %p80, %p81
      %p84 = scmp.ne.s32.totalorder %s69, %s83
      %p85 = scmp.eq.s32.totalorder %s24, 0
      %p86 = por %p84, %p85
      %s88 = sadd.s32 %s87, 1
      %p91 = scmp.eq.s32.totalorder %s18, 3
      %p92 = scmp.ne.s32.totalorder %s87, %s89
      %p93 = scmp.eq.s32.totalorder %s18, 0
      %p94 = por %p92, %p93
      %p95 = scmp.ne.s32.totalorder %s87, %s89
      %p96 = scmp.eq.s32.totalorder %s23, 3
      %p97 = por %p95, %p96
      %p98 = scmp.ne.s32.totalorder %s89, %s90
      %p99 = scmp.eq.s32.totalorder %s23, 0
      %p100 = por %p98, %p99
      %p101 = scmp.ne.s32.totalorder %s89, %s90
      %p102 = scmp.eq.s32.totalorder %s24, 3
      %p103 = por %p101, %p102
      %p105 = scmp.ne.s32.totalorder %s90, %s104
      %p106 = scmp.eq.s32.totalorder %s24, 0
      %p107 = por %p105, %p106
      %s109 = sadd.s32 %s108, 1
      %p112 = scmp.eq.s32.totalorder %s18, 3
      %p113 = scmp.ne.s32.totalorder %s108, %s110
      %p114 = scmp.eq.s32.totalorder %s18, 0
      %p115 = por %p113, %p114
      %p116 = scmp.ne.s32.totalorder %s108, %s110
      %p117 = scmp.eq.s32.totalorder %s23, 3
      %p118 = por %p116, %p117
      %p119 = scmp.ne.s32.totalorder %s110, %s111
      %p120 = scmp.eq.s32.totalorder %s23, 0
      %p121 = por %p119, %p120
      %p122 = scmp.ne.s32.totalorder %s110, %s111
      %p123 = scmp.eq.s32.totalorder %s24, 3
      %p124 = por %p122, %p123
      %p126 = scmp.ne.s32.totalorder %s111, %s125
      %p127 = scmp.eq.s32.totalorder %s24, 0
      %p128 = por %p126, %p127
      %s129 = ssub.s32 %s25, %s37
      %s130 = ssub.s32 %s26, %s33
      %s131 = sor.u32 %s129, %s130
      %p132 = scmp.eq.s32.totalorder %s131, 0
      %s134 = sadd.s32 %s133, 1
      %s135 = scalar_select %p132, %s133, %s134
      %p138 = pneg %p132
      %p139 = scmp.eq.s32.totalorder %s18, 3
      %p140 = por %p138, %p139
      %p141 = scmp.ne.s32.totalorder %s133, %s136
      %p142 = scmp.eq.s32.totalorder %s18, 0
      %p143 = por %p141, %p142
      %p144 = scmp.ne.s32.totalorder %s133, %s136
      %p145 = scmp.eq.s32.totalorder %s23, 3
      %p146 = por %p144, %p145
      %p147 = scmp.ne.s32.totalorder %s136, %s137
      %p148 = scmp.eq.s32.totalorder %s23, 0
      %p149 = por %p147, %p148
      %p150 = scmp.ne.s32.totalorder %s136, %s137
      %p151 = scmp.eq.s32.totalorder %s24, 3
      %p152 = por %p150, %p151
      %p154 = scmp.ne.s32.totalorder %s137, %s153
      %p155 = scmp.eq.s32.totalorder %s24, 0
      %p156 = por %p154, %p155
      %s157 = ssub.s32 %s25, %s37
      %s158 = ssub.s32 %s26, %s33
      %s159 = sor.u32 %s157, %s158
      %p160 = scmp.eq.s32.totalorder %s159, 0
      %s162 = sadd.s32 %s161, 1
      %s163 = scalar_select %p160, %s161, %s162
      %p166 = pneg %p160
      %p167 = scmp.eq.s32.totalorder %s18, 3
      %p168 = por %p166, %p167
      %p169 = scmp.ne.s32.totalorder %s161, %s164
      %p170 = scmp.eq.s32.totalorder %s18, 0
      %p171 = por %p169, %p170
      %p172 = scmp.ne.s32.totalorder %s161, %s164
      %p173 = scmp.eq.s32.totalorder %s23, 3
      %p174 = por %p172, %p173
      %p175 = scmp.ne.s32.totalorder %s164, %s165
      %p176 = scmp.eq.s32.totalorder %s23, 0
      %p177 = por %p175, %p176
      %p178 = scmp.ne.s32.totalorder %s164, %s165
      %p179 = scmp.eq.s32.totalorder %s24, 3
      %p180 = por %p178, %p179
      %p182 = scmp.ne.s32.totalorder %s165, %s181
      %p183 = scmp.eq.s32.totalorder %s24, 0
      %p184 = por %p182, %p183
      %p185 = scmp.le.s32.totalorder 1, %s18
      %p186 = scmp.lt.s32.totalorder %s18, 5
      %p187 = pnand %p185, %p186
      %p188 = pneg %p187
      // Predicated region
      $region9: #{tpu_custom_call.1} parent=5 // pred_check
        _
      $region10: #{tpu_custom_call.1} parent=5 // pred_check_branch
        %190 = sbr.rel (%p187) target = $region12
      $region11: #{tpu_custom_call.1} parent=5 // pred_region
        %s191 = ssub.s32 %s18, 1
        // Predicated region
        $region13: #{tpu_custom_call.1} parent=11 // pred_check
          %p192 = pneg %p79
        $region14: #{tpu_custom_call.1} parent=11 // pred_check_branch
          %194 = sbr.rel (%p192) target = $region16
        $region15: #{tpu_custom_call.1} parent=11 // pred_region
          _
        $region16: #{tpu_custom_call.1} parent=11 // pred_fallthru
          _
        // Predicated region
        $region17: #{tpu_custom_call.1} parent=11 // pred_check
          %p195 = pneg %p100
        $region18: #{tpu_custom_call.1} parent=11 // pred_check_branch
          %197 = sbr.rel (%p195) target = $region20
        $region19: #{tpu_custom_call.1} parent=11 // pred_region
          _
        $region20: #{tpu_custom_call.1} parent=11 // pred_fallthru
          _
        // Predicated region
        $region21: #{tpu_custom_call.1} parent=11 // pred_check
          %p198 = pneg %p121
        $region22: #{tpu_custom_call.1} parent=11 // pred_check_branch
          %200 = sbr.rel (%p198) target = $region24
        $region23: #{tpu_custom_call.1} parent=11 // pred_region
          _
        $region24: #{tpu_custom_call.1} parent=11 // pred_fallthru
          _
      $region12: #{tpu_custom_call.1} parent=5 // pred_fallthru
        _
      %p201 = scmp.lt.s32.totalorder %s18, 4
      // Predicated region
      $region25: #{tpu_custom_call.1} parent=5 // pred_check
        %p202 = pneg %p201
      $region26: #{tpu_custom_call.1} parent=5 // pred_check_branch
        %204 = sbr.rel (%p202) target = $region28
      $region27: #{tpu_custom_call.1} parent=5 // pred_region
        // Predicated region
        $region29: #{tpu_custom_call.1} parent=27 // pred_check
          %p205 = pneg %p52
        $region30: #{tpu_custom_call.1} parent=27 // pred_check_branch
          %207 = sbr.rel (%p205) target = $region32
        $region31: #{tpu_custom_call.1} parent=27 // pred_region
          %p208 = scmp.lt.s32.totalorder %s25, 1
          %s209 = scalar_select %p208, %s25, 1
          %p210 = scmp.lt.s32.totalorder %s26, 1
          %s211 = scalar_select %p210, %s26, 1
          %s212 = smul.addr %s209, 2
          %s213 = sadd.s32 %s211, %s212
          %s214 = smul.addr %s213, 4
          %s215 = scalar_lea.vmem %s0, %s214
        $region32: #{tpu_custom_call.1} parent=27 // pred_fallthru
          _
      $region28: #{tpu_custom_call.1} parent=5 // pred_fallthru
        _
      %p216 = scmp.le.s32.totalorder 1, %s18
      %p217 = scmp.lt.s32.totalorder %s18, 5
      %p218 = pnand %p216, %p217
      %p219 = pneg %p218
      // Predicated region
      $region33: #{tpu_custom_call.1} parent=5 // pred_check
        _
      $region34: #{tpu_custom_call.1} parent=5 // pred_check_branch
        %221 = sbr.rel (%p218) target = $region36
      $region35: #{tpu_custom_call.1} parent=5 // pred_region
        %s222 = ssub.s32 %s18, 1
        %p223 = scmp.lt.s32.totalorder %s27, 1
        %s224 = scalar_select %p223, %s27, 1
        %p225 = scmp.lt.s32.totalorder %s28, 1
        %s226 = scalar_select %p225, %s28, 1
        %s227 = smul.addr %s224, 2
        %s228 = sadd.s32 %s226, %s227
        %s229 = smul.addr %s228, 4
        %s230 = scalar_lea.vmem %s0, %s229
        %p231 = pneg %p58
        %p232 = pneg %p55
        %p233 = pneg %p79
        %p234 = pneg %p76
        %p235 = pneg %p100
        %p236 = pneg %p97
        %p237 = pneg %p121
        %p238 = pneg %p118
        %p239 = pneg %p149
        %p240 = pneg %p146
        %s241 = sand.u32 %s136, 1
        %s242 = scalar_lea.sflag [#allocation3], %s241
        %s243 = sand.u32 %s136, 1
        %s244 = smul.addr %s243, 4
        %s245 = scalar_lea.vmem [#allocation2], %s244
        %p246 = pneg %p177
        %p247 = pneg %p174
        %s248 = sand.u32 %s164, 1
        %s249 = scalar_lea.sflag [#allocation5], %s248
        %s250 = sand.u32 %s164, 1
        %s251 = scalar_lea.vmem [#allocation4], %s250
        %p252 = scmp.lt.s32.totalorder %s27, 1
        %s253 = scalar_select %p252, %s27, 1
        %p254 = scmp.lt.s32.totalorder %s28, 1
        %s255 = scalar_select %p254, %s28, 1
        %s256 = smul.addr %s253, 2
        %s257 = sadd.s32 %s255, %s256
        %s258 = smul.addr %s257, 4
        %s259 = scalar_lea.vmem %s0, %s258
        %v260 = vld [vmem:[%s259] sm:$0xf]
        %v261 = vld [vmem:[%s1] sm:$0xff]
        %v262 = vld [vmem:[%s1 + $0x8] sm:$0xff]
        %vm263 = vcmask 31744
        %v265 = vsel %vm263, %v261, 0
        %v268 = vsel %vm263, %v262, 0
        %vm270 = vcmask 1043456
        %v272 = vsel %vm270, %v260, 0
        %274 = vmatprep.subr.mxu0 0.0
        %275 = vmatpush1.msra.mxu0 %v272
        %276 = vmatprep.subr.mxu0 0.0
        %277 = vmatpush1.msra.mxu0 0.0
        %278 = vmatprep.subr.mxu0 0.0
        %279 = vmatpush1.msra.mxu0 0.0
        %280 = vmatprep.subr.mxu0 0.0
        %281 = vmatpush1.msra.mxu0 0.0
        %282 = vmatprep.subr.mxu0 0.0
        %283 = vmatpush1.msra.mxu0 0.0
        %284 = vmatprep.subr.mxu0 0.0
        %285 = vmatpush1.msra.mxu0 0.0
        %286 = vmatprep.subr.mxu0 0.0
        %287 = vmatpush1.msra.mxu0 0.0
        %288 = vmatprep.subr.mxu0 0.0
        %289 = vmatpush1.msra.mxu0 0.0
        %290 = vmatprep.subr.mxu0 0.0
        %291 = vmatpush1.msra.mxu0 0.0
        %292 = vmatprep.subr.mxu0 0.0
        %293 = vmatpush1.msra.mxu0 0.0
        %294 = vmatprep.subr.mxu0 0.0
        %295 = vmatpush1.msra.mxu0 0.0
        %296 = vmatprep.subr.mxu0 0.0
        %297 = vmatpush1.msra.mxu0 0.0
        %298 = vmatprep.subr.mxu0 0.0
        %299 = vmatpush1.msra.mxu0 0.0
        %300 = vmatprep.subr.mxu0 0.0
        %301 = vmatpush1.msra.mxu0 0.0
        %302 = vmatprep.subr.mxu0 0.0
        %303 = vmatpush1.msra.mxu0 0.0
        %304 = vmatprep.subr.mxu0 0.0
        %305 = vmatpush1.msra.mxu0 0.0
        %306 = vmatprep.subr.mxu0 0.0
        %307 = vmatpush1.msra.mxu0 0.0
        %308 = vmatprep.subr.mxu0 0.0
        %309 = vmatpush1.msra.mxu0 0.0
        %310 = vmatprep.subr.mxu0 0.0
        %311 = vmatpush1.msra.mxu0 0.0
        %312 = vmatprep.subr.mxu0 0.0
        %313 = vmatpush1.msra.mxu0 0.0
        %314 = vmatprep.subr.mxu0 0.0
        %315 = vmatpush1.msra.mxu0 0.0
        %316 = vmatprep.subr.mxu0 0.0
        %317 = vmatpush1.msra.mxu0 0.0
        %318 = vmatprep.subr.mxu0 0.0
        %319 = vmatpush1.msra.mxu0 0.0
        %320 = vmatprep.subr.mxu0 0.0
        %321 = vmatpush1.msra.mxu0 0.0
        %322 = vmatprep.subr.mxu0 0.0
        %323 = vmatpush1.msra.mxu0 0.0
        %324 = vmatprep.subr.mxu0 0.0
        %325 = vmatpush1.msra.mxu0 0.0
        %326 = vmatprep.subr.mxu0 0.0
        %327 = vmatpush1.msra.mxu0 0.0
        %328 = vmatprep.subr.mxu0 0.0
        %329 = vmatpush1.msra.mxu0 0.0
        %330 = vmatprep.subr.mxu0 0.0
        %331 = vmatpush1.msra.mxu0 0.0
        %332 = vmatprep.subr.mxu0 0.0
        %333 = vmatpush1.msra.mxu0 0.0
        %334 = vmatprep.subr.mxu0 0.0
        %335 = vmatpush1.msra.mxu0 0.0
        %336 = vmatprep.subr.mxu0 0.0
        %337 = vmatpush1.msra.mxu0 0.0
        %338 = vmatprep.mubr.f32.mxu0 0.0
        %339 = vmatmul.mubr.f32.gmra.mrb[0].mxu0 %v265
        %v340 = vpop.f32.mrb[0].mxu0
        %v341 = vadd.f32 0.0, %v340
        %v342 = vpop.f32.mrb[0].mxu0
        %343 = vmatprep.mubr.f32.mxu0 0.0
        %344 = vmatmul.mubr.f32.gmra.mrb[0].mxu0 %v268
        %v345 = vpop.f32.mrb[0].mxu0
        %v346 = vadd.f32 0.0, %v345
        %v347 = vpop.f32.mrb[0].mxu0
        %348 = vdwg.mxu0
        %v349 = vld [vmem:[%s3] sm:$0xff]
        %v350 = vld [vmem:[%s3 + $0x8] sm:$0xff]
        %352 = vset.pattern.permute.xlu0 0
        %353 = vperm.xlu0 %352, %v349
        %v354 = vpop.permute.xlu0 %353
        %357 = vset.pattern.permute.xlu0 0
        %358 = vperm.xlu0 %357, %v350
        %v359 = vpop.permute.xlu0 %358
        %v361 = vsub.f32 %v354, %v341
        %v362 = vsub.f32 %v359, %v346
        %v363 = vmin.f32 %v361, %v362
        %v364 = vrot.slane %v363, 4
        %v365 = vmin.f32 %v363, %v364
        %v366 = vrot.slane %v365, 2
        %v367 = vmin.f32 %v365, %v366
        %v368 = vrot.slane %v367, 1
        %v369 = vmin.f32 %v367, %v368
        %v370 = vlaneseq
        %v371 = vshrl.u32 %v370, 7
        %v372 = vadd.s32 %v371, 8
        %vm373 = vcmp.le.f32.partialorder %v361, %v369
        %vm374 = vcmp.le.f32.partialorder %v362, %v369
        %v375 = vsel %vm373, %v371, 16
        %v376 = vsel %vm374, %v372, 16
        %vm377 = vcmp.lt.s32.totalorder %v375, %v376
        %v378 = vsel %vm377, %v375, %v376
        %v379 = vrot.slane %v378, 4
        %vm380 = vcmp.lt.s32.totalorder %v378, %v379
        %v381 = vsel %vm380, %v378, %v379
        %v382 = vrot.slane %v381, 2
        %vm383 = vcmp.lt.s32.totalorder %v381, %v382
        %v384 = vsel %vm383, %v381, %v382
        %v385 = vrot.slane %v384, 1
        %vm386 = vcmp.lt.s32.totalorder %v384, %v385
        %v387 = vsel %vm386, %v384, %v385
        %388 = vst [vmem:[%s251] sm:$0x1] %v387
        %vm389 = vcmp.eq.s32.totalorder %v371, %v387
        %vm390 = vcmp.eq.s32.totalorder %v372, %v387
        %v391 = vsel %vm389, 1, 0
        %v392 = vsel %vm390, 1, 0
        %v393 = vcvt.s32.f32 %v391
        %v394 = vcvt.s32.f32 %v392
        %v395 = vld [vmem:[%s2] sm:$0xf]
        %vm396 = vcmask 130048
        %v398 = vsel %vm396, %v395, 0
        %400 = vmatprep.subr.mxu0 0.0
        %401 = vmatpush1.msra.mxu0 %v393
        %402 = vmatprep.subr.mxu0 0.0
        %403 = vmatpush1.msra.mxu0 %v394
        %404 = vmatprep.subr.mxu0 0.0
        %405 = vmatpush1.msra.mxu0 0.0
        %406 = vmatprep.subr.mxu0 0.0
        %407 = vmatpush1.msra.mxu0 0.0
        %408 = vmatprep.subr.mxu0 0.0
        %409 = vmatpush1.msra.mxu0 0.0
        %410 = vmatprep.subr.mxu0 0.0
        %411 = vmatpush1.msra.mxu0 0.0
        %412 = vmatprep.subr.mxu0 0.0
        %413 = vmatpush1.msra.mxu0 0.0
        %414 = vmatprep.subr.mxu0 0.0
        %415 = vmatpush1.msra.mxu0 0.0
        %416 = vmatprep.subr.mxu0 0.0
        %417 = vmatpush1.msra.mxu0 0.0
        %418 = vmatprep.subr.mxu0 0.0
        %419 = vmatpush1.msra.mxu0 0.0
        %420 = vmatprep.subr.mxu0 0.0
        %421 = vmatpush1.msra.mxu0 0.0
        %422 = vmatprep.subr.mxu0 0.0
        %423 = vmatpush1.msra.mxu0 0.0
        %424 = vmatprep.subr.mxu0 0.0
        %425 = vmatpush1.msra.mxu0 0.0
        %426 = vmatprep.subr.mxu0 0.0
        %427 = vmatpush1.msra.mxu0 0.0
        %428 = vmatprep.subr.mxu0 0.0
        %429 = vmatpush1.msra.mxu0 0.0
        %430 = vmatprep.subr.mxu0 0.0
        %431 = vmatpush1.msra.mxu0 0.0
        %432 = vmatprep.subr.mxu0 0.0
        %433 = vmatpush1.msra.mxu0 0.0
        %434 = vmatprep.subr.mxu0 0.0
        %435 = vmatpush1.msra.mxu0 0.0
        %436 = vmatprep.subr.mxu0 0.0
        %437 = vmatpush1.msra.mxu0 0.0
        %438 = vmatprep.subr.mxu0 0.0
        %439 = vmatpush1.msra.mxu0 0.0
        %440 = vmatprep.subr.mxu0 0.0
        %441 = vmatpush1.msra.mxu0 0.0
        %442 = vmatprep.subr.mxu0 0.0
        %443 = vmatpush1.msra.mxu0 0.0
        %444 = vmatprep.subr.mxu0 0.0
        %445 = vmatpush1.msra.mxu0 0.0
        %446 = vmatprep.subr.mxu0 0.0
        %447 = vmatpush1.msra.mxu0 0.0
        %448 = vmatprep.subr.mxu0 0.0
        %449 = vmatpush1.msra.mxu0 0.0
        %450 = vmatprep.subr.mxu0 0.0
        %451 = vmatpush1.msra.mxu0 0.0
        %452 = vmatprep.subr.mxu0 0.0
        %453 = vmatpush1.msra.mxu0 0.0
        %454 = vmatprep.subr.mxu0 0.0
        %455 = vmatpush1.msra.mxu0 0.0
        %456 = vmatprep.subr.mxu0 0.0
        %457 = vmatpush1.msra.mxu0 0.0
        %458 = vmatprep.subr.mxu0 0.0
        %459 = vmatpush1.msra.mxu0 0.0
        %460 = vmatprep.subr.mxu0 0.0
        %461 = vmatpush1.msra.mxu0 0.0
        %462 = vmatprep.subr.mxu0 0.0
        %463 = vmatpush1.msra.mxu0 0.0
        %464 = vmatprep.mubr.f32.mxu0 0.0
        %465 = vmatmul.mubr.f32.gmra.mrb[0].mxu0 %v398
        %v466 = vpop.f32.mrb[0].mxu0
        %v467 = vadd.f32 0.0, %v466
        %v468 = vpop.f32.mrb[0].mxu0
        %469 = vdwg.mxu0
        %470 = vst [vmem:[%s245] sm:$0xf] %v467
        %s471 = sand.u32 %s136, 1
        %s472 = scalar_lea.sflag [#allocation3], %s471
        %s473 = sand.u32 %s136, 1
        %s474 = smul.addr %s473, 4
        %s475 = scalar_lea.vmem [#allocation2], %s474
        %s476 = sand.u32 %s164, 1
        %s477 = scalar_lea.sflag [#allocation5], %s476
        %s478 = sand.u32 %s164, 1
        %s479 = scalar_lea.vmem [#allocation4], %s478
        // Predicated region
        $region37: #{tpu_custom_call.1} parent=35 // pred_check
          %p480 = pneg %p146
        $region38: #{tpu_custom_call.1} parent=35 // pred_check_branch
          %482 = sbr.rel (%p480) target = $region40
        $region39: #{tpu_custom_call.1} parent=35 // pred_region
          %s484 = ssub.s32 64, 64
          %485 = vsyncadd %s472, %s484
          %s486 = smul.addr %s27, 2
          %s487 = sadd.s32 %s28, %s486
          %s488 = smul.addr %s487, 64
          %s489 = scalar_lea.hbm %s4, %s488
          %s491 = sshll.u32 %s475, 4
          %s492 = int_to_ptr.vmem [resolvable:$true] %s491
          %494 = dma.vmem_to_hbm [thread:$0]  %s492, 64, %s489, %s472
        $region40: #{tpu_custom_call.1} parent=35 // pred_fallthru
          _
        // Predicated region
        $region41: #{tpu_custom_call.1} parent=35 // pred_check
          %p495 = pneg %p174
        $region42: #{tpu_custom_call.1} parent=35 // pred_check_branch
          %497 = sbr.rel (%p495) target = $region44
        $region43: #{tpu_custom_call.1} parent=35 // pred_region
          %s499 = ssub.s32 16, 16
          %500 = vsyncadd %s477, %s499
          %s501 = smul.addr %s27, 2
          %s502 = sadd.s32 %s28, %s501
          %s503 = smul.addr %s502, 16
          %s504 = scalar_lea.hbm %s5, %s503
          %s506 = sshll.u32 %s479, 4
          %s507 = int_to_ptr.vmem [resolvable:$true] %s506
          %509 = dma.vmem_to_hbm [thread:$0]  %s507, 16, %s504, %s477
        $region44: #{tpu_custom_call.1} parent=35 // pred_fallthru
          _
      $region36: #{tpu_custom_call.1} parent=5 // pred_fallthru
        _
      %p510 = scmp.le.s32.totalorder 2, %s18
      // Predicated region
      $region45: #{tpu_custom_call.1} parent=5 // pred_check
        %p511 = pneg %p510
      $region46: #{tpu_custom_call.1} parent=5 // pred_check_branch
        %513 = sbr.rel (%p511) target = $region48
      $region47: #{tpu_custom_call.1} parent=5 // pred_region
        %s514 = ssub.s32 %s18, 2
        // Predicated region
        $region49: #{tpu_custom_call.1} parent=47 // pred_check
          %p515 = pneg %p152
        $region50: #{tpu_custom_call.1} parent=47 // pred_check_branch
          %517 = sbr.rel (%p515) target = $region52
        $region51: #{tpu_custom_call.1} parent=47 // pred_region
          %s518 = sand.u32 %s137, 1
          %s519 = scalar_lea.sflag [#allocation3], %s518
          %s520 = sand.u32 %s137, 1
          %s521 = smul.addr %s520, 4
          %s522 = scalar_lea.vmem [#allocation2], %s521
          %523 = dma.done %s519, 64
        $region52: #{tpu_custom_call.1} parent=47 // pred_fallthru
          _
        // Predicated region
        $region53: #{tpu_custom_call.1} parent=47 // pred_check
          %p524 = pneg %p180
        $region54: #{tpu_custom_call.1} parent=47 // pred_check_branch
          %526 = sbr.rel (%p524) target = $region56
        $region55: #{tpu_custom_call.1} parent=47 // pred_region
          %s527 = sand.u32 %s165, 1
          %s528 = scalar_lea.sflag [#allocation5], %s527
          %s529 = sand.u32 %s165, 1
          %s530 = scalar_lea.vmem [#allocation4], %s529
          %531 = dma.done %s528, 16
        $region56: #{tpu_custom_call.1} parent=47 // pred_fallthru
          _
      $region48: #{tpu_custom_call.1} parent=5 // pred_fallthru
        _
    $region6: #{tpu_custom_call.1} parent=1 // loop_footer
      %s22 = sadd.s32 1, %s18
    $region7: #{tpu_custom_call.1} parent=1 // loop_footer_branch
      %17 = sbr.rel target = $region3
    $region8: #{tpu_custom_call.1} parent=1 // loop_exit
      _
    %532 = vsyncpa [#allocation3], 1
    %s533 = scalar_lea.sflag [#allocation3], 1
    %534 = vsyncpa %s533, 1
    %535 = vsyncpa [#allocation5], 1
    %s536 = scalar_lea.sflag [#allocation5], 1
    %537 = vsyncpa %s536, 1

</llo_original>
